<compile_context>
chip_gen: v5e
topology: v5e:2x2
jax: 0.10.0
libtpu: 0.0.40
codegen_flags: <defaults>
</compile_context>

<pallas_src>
import jax
import jax.numpy as jnp
from jax.experimental import pallas as pl
from jax.experimental.pallas import tpu as pltpu

NEG_SLOPE = 0.01  # torch.nn.LeakyReLU() default


def _leaky_relu_kernel(r_ref, i_ref, j_ref, k_ref,
                       ro_ref, io_ref, jo_ref, ko_ref):
    # Fused elementwise pass over all four quaternion components.
    for src, dst in ((r_ref, ro_ref), (i_ref, io_ref),
                     (j_ref, jo_ref), (k_ref, ko_ref)):
        x = src[...]
        dst[...] = jnp.maximum(x, NEG_SLOPE * x)


def _sublane_multiple(dtype):
    # f32 -> 8 sublanes/vreg, bf16 -> 16, int8/fp8 -> 32
    nbytes = jnp.dtype(dtype).itemsize
    return max(8, 32 // nbytes)


def _pick_lane(total):
    """Pick a lane width (multiple of 128).

    Prefer one that divides `total` exactly (no wrapper-side pad copy);
    otherwise fall back to 128 which keeps the pad < 128 elements.
    """
    for lane in (2048, 1024, 512, 256, 128):
        if total % lane == 0:
            return lane, 0
    lane = 128
    return lane, (-total) % lane


def complex_leaky_relu(real, imag_i, imag_j, imag_k,
                       *, vmem_budget_bytes=8 * 1024 * 1024):
    """LeakyReLU(0.01) applied elementwise to each quaternion component.

    All four inputs must share the same shape and dtype. Works for any shape:
    each component is flattened to a lane-dense 2-D slab internally.
    """
    assert real.shape == imag_i.shape == imag_j.shape == imag_k.shape
    assert real.dtype == imag_i.dtype == imag_j.dtype == imag_k.dtype

    orig_shape = real.shape
    dtype = real.dtype
    itemsize = jnp.dtype(dtype).itemsize
    total = real.size

    # --- lane-dense flattening (full, unmasked vector stores) --------------
    lane, pad = _pick_lane(total)
    padded = total + pad
    rows = padded // lane

    def to_slab(x):
        x = x.reshape(-1)
        if pad:
            x = jnp.pad(x, (0, pad))
        return x.reshape(rows, lane)

    slabs = [to_slab(a) for a in (real, imag_i, imag_j, imag_k)]

    # --- VMEM-budgeted row tiling -------------------------------------------
    # Resident per grid step: 4 in + 4 out blocks, each double-buffered.
    sub = _sublane_multiple(dtype)
    row_bytes = lane * itemsize
    max_tile_rows = max(sub, vmem_budget_bytes // (16 * row_bytes))
    tile_rows = min(rows, max_tile_rows)
    if tile_rows < rows:
        # Keep tiles on the sublane-packing granularity; ragged trailing
        # block (rows % tile_rows) is handled by Pallas.
        tile_rows = max(sub, (tile_rows // sub) * sub)

    grid = (pl.cdiv(rows, tile_rows),)
    blk = pl.BlockSpec((tile_rows, lane), lambda n: (n, 0))
    out_sds = jax.ShapeDtypeStruct((rows, lane), dtype)

    cost = pl.CostEstimate(
        flops=2 * 4 * total,                  # mul + max per element, 4 arrays
        transcendentals=0,
        bytes_accessed=8 * total * itemsize,  # 4 reads + 4 writes
    )

    fn = pl.pallas_call(
        _leaky_relu_kernel,
        out_shape=(out_sds, out_sds, out_sds, out_sds),
        grid_spec=pltpu.PrefetchScalarGridSpec(
            num_scalar_prefetch=0,
            grid=grid,
            in_specs=[blk, blk, blk, blk],
            out_specs=[blk, blk, blk, blk],
        ),
        compiler_params=pltpu.CompilerParams(
            dimension_semantics=("parallel",),
            vmem_limit_bytes=32 * 1024 * 1024,
        ),
        cost_estimate=cost,
    )
    outs = fn(*slabs)

    def from_slab(y):
        y = y.reshape(-1)
        if pad:
            y = y[:total]
        return y.reshape(orig_shape)

    return tuple(from_slab(y) for y in outs)


if __name__ == "__main__":
    key = jax.random.PRNGKey(0)
    k_r, k_i, k_j, k_k = jax.random.split(key, 4)

    # Small node-feature matrix [nodes, features]; F deliberately not a
    # multiple of 128 to exercise the lane-dense pad/unpad path.
    N, F = 16, 100
    real = jax.random.normal(k_r, (N, F), dtype=jnp.float32)
    imag_i = jax.random.normal(k_i, (N, F), dtype=jnp.float32)
    imag_j = jax.random.normal(k_j, (N, F), dtype=jnp.float32)
    imag_k = jax.random.normal(k_k, (N, F), dtype=jnp.float32)

    out_r, out_i, out_j, out_k = complex_leaky_relu(real, imag_i, imag_j, imag_k)
    jax.block_until_ready((out_r, out_i, out_j, out_k))

    # Verify against pure-JAX reference of torch.nn.LeakyReLU (slope 0.01).
    def ref(x):
        return jnp.where(x >= 0, x, NEG_SLOPE * x)

    for got, inp in ((out_r, real), (out_i, imag_i),
                     (out_j, imag_j), (out_k, imag_k)):
        assert got.shape == inp.shape
        assert jnp.allclose(got, ref(inp), atol=1e-6), "mismatch vs reference"

    print("KERNEL_OK")
</pallas_src>

<mosaic_0001>
module attributes {stable_mosaic.version = 11 : i64} {
  func.func @_leaky_relu_kernel(%arg0: i32, %arg1: memref<13x128xf32, #tpu.memory_space<vmem>>, %arg2: memref<13x128xf32, #tpu.memory_space<vmem>>, %arg3: memref<13x128xf32, #tpu.memory_space<vmem>>, %arg4: memref<13x128xf32, #tpu.memory_space<vmem>>, %arg5: memref<13x128xf32, #tpu.memory_space<vmem>>, %arg6: memref<13x128xf32, #tpu.memory_space<vmem>>, %arg7: memref<13x128xf32, #tpu.memory_space<vmem>>, %arg8: memref<13x128xf32, #tpu.memory_space<vmem>>) attributes {dimension_semantics = [#tpu.dimension_semantics<parallel>], iteration_bounds = array<i64: 1>, scalar_prefetch = 0 : i64, scratch_operands = 0 : i64, tpu.core_type = #tpu.core_type<tc>, window_params = [{transform_indices = @transform_0, window_bounds = array<i64: 13, 128>}, {transform_indices = @transform_1, window_bounds = array<i64: 13, 128>}, {transform_indices = @transform_2, window_bounds = array<i64: 13, 128>}, {transform_indices = @transform_3, window_bounds = array<i64: 13, 128>}, {transform_indices = @transform_4, window_bounds = array<i64: 13, 128>}, {transform_indices = @transform_5, window_bounds = array<i64: 13, 128>}, {transform_indices = @transform_6, window_bounds = array<i64: 13, 128>}, {transform_indices = @transform_7, window_bounds = array<i64: 13, 128>}]} {
    %c0 = arith.constant 0 : index
    %c0_0 = arith.constant 0 : index
    %0 = vector.load %arg1[%c0, %c0_0] : memref<13x128xf32, #tpu.memory_space<vmem>>, vector<13x128xf32>
    %cst = arith.constant 0.00999999977 : f32
    %1 = vector.broadcast %cst : f32 to vector<13x128xf32>
    %2 = arith.mulf %1, %0 : vector<13x128xf32>
    %3 = arith.maximumf %0, %2 : vector<13x128xf32>
    %c0_1 = arith.constant 0 : index
    %c0_2 = arith.constant 0 : index
    %4 = vector.load %arg5[%c0_1, %c0_2] : memref<13x128xf32, #tpu.memory_space<vmem>>, vector<13x128xf32>
    tpu.vector_store %arg5[%c0_1, %c0_2], %3 {strides = array<i32>} : memref<13x128xf32, #tpu.memory_space<vmem>>, vector<13x128xf32>,
    %c0_3 = arith.constant 0 : index
    %c0_4 = arith.constant 0 : index
    %5 = vector.load %arg2[%c0_3, %c0_4] : memref<13x128xf32, #tpu.memory_space<vmem>>, vector<13x128xf32>
    %cst_5 = arith.constant 0.00999999977 : f32
    %6 = vector.broadcast %cst_5 : f32 to vector<13x128xf32>
    %7 = arith.mulf %6, %5 : vector<13x128xf32>
    %8 = arith.maximumf %5, %7 : vector<13x128xf32>
    %c0_6 = arith.constant 0 : index
    %c0_7 = arith.constant 0 : index
    %9 = vector.load %arg6[%c0_6, %c0_7] : memref<13x128xf32, #tpu.memory_space<vmem>>, vector<13x128xf32>
    tpu.vector_store %arg6[%c0_6, %c0_7], %8 {strides = array<i32>} : memref<13x128xf32, #tpu.memory_space<vmem>>, vector<13x128xf32>,
    %c0_8 = arith.constant 0 : index
    %c0_9 = arith.constant 0 : index
    %10 = vector.load %arg3[%c0_8, %c0_9] : memref<13x128xf32, #tpu.memory_space<vmem>>, vector<13x128xf32>
    %cst_10 = arith.constant 0.00999999977 : f32
    %11 = vector.broadcast %cst_10 : f32 to vector<13x128xf32>
    %12 = arith.mulf %11, %10 : vector<13x128xf32>
    %13 = arith.maximumf %10, %12 : vector<13x128xf32>
    %c0_11 = arith.constant 0 : index
    %c0_12 = arith.constant 0 : index
    %14 = vector.load %arg7[%c0_11, %c0_12] : memref<13x128xf32, #tpu.memory_space<vmem>>, vector<13x128xf32>
    tpu.vector_store %arg7[%c0_11, %c0_12], %13 {strides = array<i32>} : memref<13x128xf32, #tpu.memory_space<vmem>>, vector<13x128xf32>,
    %c0_13 = arith.constant 0 : index
    %c0_14 = arith.constant 0 : index
    %15 = vector.load %arg4[%c0_13, %c0_14] : memref<13x128xf32, #tpu.memory_space<vmem>>, vector<13x128xf32>
    %cst_15 = arith.constant 0.00999999977 : f32
    %16 = vector.broadcast %cst_15 : f32 to vector<13x128xf32>
    %17 = arith.mulf %16, %15 : vector<13x128xf32>
    %18 = arith.maximumf %15, %17 : vector<13x128xf32>
    %c0_16 = arith.constant 0 : index
    %c0_17 = arith.constant 0 : index
    %19 = vector.load %arg8[%c0_16, %c0_17] : memref<13x128xf32, #tpu.memory_space<vmem>>, vector<13x128xf32>
    tpu.vector_store %arg8[%c0_16, %c0_17], %18 {strides = array<i32>} : memref<13x128xf32, #tpu.memory_space<vmem>>, vector<13x128xf32>,
    return
  }
  func.func @transform_0(%arg0: i32) -> (i32, i32) {
    %c0_i32 = arith.constant 0 : i32
    %c0_i32_0 = arith.constant 0 : i32
    return %arg0, %c0_i32 : i32, i32
  }
  func.func @transform_1(%arg0: i32) -> (i32, i32) {
    %c0_i32 = arith.constant 0 : i32
    %c0_i32_0 = arith.constant 0 : i32
    return %arg0, %c0_i32 : i32, i32
  }
  func.func @transform_2(%arg0: i32) -> (i32, i32) {
    %c0_i32 = arith.constant 0 : i32
    %c0_i32_0 = arith.constant 0 : i32
    return %arg0, %c0_i32 : i32, i32
  }
  func.func @transform_3(%arg0: i32) -> (i32, i32) {
    %c0_i32 = arith.constant 0 : i32
    %c0_i32_0 = arith.constant 0 : i32
    return %arg0, %c0_i32 : i32, i32
  }
  func.func @transform_4(%arg0: i32) -> (i32, i32) {
    %c0_i32 = arith.constant 0 : i32
    %c0_i32_0 = arith.constant 0 : i32
    return %arg0, %c0_i32 : i32, i32
  }
  func.func @transform_5(%arg0: i32) -> (i32, i32) {
    %c0_i32 = arith.constant 0 : i32
    %c0_i32_0 = arith.constant 0 : i32
    return %arg0, %c0_i32 : i32, i32
  }
  func.func @transform_6(%arg0: i32) -> (i32, i32) {
    %c0_i32 = arith.constant 0 : i32
    %c0_i32_0 = arith.constant 0 : i32
    return %arg0, %c0_i32 : i32, i32
  }
  func.func @transform_7(%arg0: i32) -> (i32, i32) {
    %c0_i32 = arith.constant 0 : i32
    %c0_i32_0 = arith.constant 0 : i32
    return %arg0, %c0_i32 : i32, i32
  }
}

</mosaic_0001>

<llo_original>
// kernel: tpu_custom_call.1
$region0: #{tpu_custom_call.1}
  #allocation0 [shape = 'u32[]', space=smem, size = 0x4, offset = 0x4, fixed_abs, tag = 'smem constant byte address 0x4 - core index']
  #allocation1 [shape = 'u32[72,128]{1,0:T(1,128)}', space=vmem, size = 0x9000, scoped, tag = 'internal scratch']
  %s0 = inlined_call_operand.hbm [shape: f32[13,128], index: 0, kind: input, shape index: {}]
  %s1 = inlined_call_operand.hbm [shape: f32[13,128], index: 1, kind: input, shape index: {}]
  %s2 = inlined_call_operand.hbm [shape: f32[13,128], index: 2, kind: input, shape index: {}]
  %s3 = inlined_call_operand.hbm [shape: f32[13,128], index: 3, kind: input, shape index: {}]
  %s4 = inlined_call_operand.hbm [shape: f32[13,128], index: 4, kind: output, shape index: {0}]
  %s5 = inlined_call_operand.hbm [shape: f32[13,128], index: 5, kind: output, shape index: {1}]
  %s6 = inlined_call_operand.hbm [shape: f32[13,128], index: 6, kind: output, shape index: {2}]
  %s7 = inlined_call_operand.hbm [shape: f32[13,128], index: 7, kind: output, shape index: {3}]
  %8 = xla_tuple %s4, %s5, %s6, %s7
  %s9 = sld [smem:[#allocation0]]
  $region66: #{tpu_custom_call.1} parent=0
    _
  %s11 = ssub.s32 1, %s9
  %s12 = scalar_select 0, %s11, %s9
  $region1: #{tpu_custom_call.1} parent=0
    #allocation2 [shape = 'u8[8192]{0}', space=vmem, size = 0x2000, scoped, tag = 'input window, operand 0, single buffered']
    #allocation3 [shape = 's32[1]{0}', space=sflag, size = 0x4, scoped, tag = 'scoped memory for tpu_custom_call.1']
    #allocation4 [shape = 's32[1]{0}', space=sflag, size = 0x4, scoped, tag = 'scoped memory for tpu_custom_call.1']
    #allocation5 [shape = 'u8[8192]{0}', space=vmem, size = 0x2000, scoped, tag = 'input window, operand 1, single buffered']
    #allocation6 [shape = 's32[1]{0}', space=sflag, size = 0x4, scoped, tag = 'scoped memory for tpu_custom_call.1']
    #allocation7 [shape = 'u8[8192]{0}', space=vmem, size = 0x2000, scoped, tag = 'input window, operand 2, single buffered']
    #allocation8 [shape = 'u8[8192]{0}', space=vmem, size = 0x2000, scoped, tag = 'input window, operand 3, single buffered']
    #allocation9 [shape = 's32[1]{0}', space=sflag, size = 0x4, scoped, tag = 'scoped memory for tpu_custom_call.1']
    #allocation10 [shape = 'u8[8192]{0}', space=vmem, size = 0x2000, scoped, tag = 'output window, operand 0, single buffered']
    #allocation11 [shape = 'u8[8192]{0}', space=vmem, size = 0x2000, scoped, tag = 'output window, operand 1, single buffered']
    #allocation12 [shape = 's32[1]{0}', space=sflag, size = 0x4, scoped, tag = 'scoped memory for tpu_custom_call.1']
    #allocation13 [shape = 'u8[8192]{0}', space=vmem, size = 0x2000, scoped, tag = 'output window, operand 2, single buffered']
    #allocation14 [shape = 'u8[8192]{0}', space=vmem, size = 0x2000, scoped, tag = 'output window, operand 3, single buffered']
    #allocation15 [shape = 's32[1]{0}', space=sflag, size = 0x4, scoped, tag = 'scoped memory for tpu_custom_call.1']
    %13 = vsyncpa [#allocation3], 0
    %14 = vsyncpa [#allocation6], 0
    %15 = vsyncpa [#allocation9], 0
    %16 = vsyncpa [#allocation4], 0
    %17 = vsyncpa [#allocation12], 0
    %18 = vsyncpa [#allocation15], 0
    // Predicated region
    $region2: #{tpu_custom_call.1} parent=1 // pred_check
      _
    $region3: #{tpu_custom_call.1} parent=1 // pred_check_branch
      %20 = sbr.rel (0) target = $region5
    $region4: #{tpu_custom_call.1} parent=1 // pred_region
      %22 = vsyncadd [#allocation3], 0
      %s23 = sshll.u32 %s0, 4
      %s24 = int_to_ptr.hbm [resolvable:$true] %s23
      %s25 = sshll.u32 [#allocation2], 4
      %s26 = int_to_ptr.vmem [resolvable:$true] %s25
      %31 = dma.hbm_to_vmem [thread:$0]  %s24, 256, %s26, [#allocation3], 128, 128, 8
    $region5: #{tpu_custom_call.1} parent=1 // pred_fallthru
      _
    // Predicated region
    $region6: #{tpu_custom_call.1} parent=1 // pred_check
      _
    $region7: #{tpu_custom_call.1} parent=1 // pred_check_branch
      %33 = sbr.rel (0) target = $region9
    $region8: #{tpu_custom_call.1} parent=1 // pred_region
      %35 = vsyncadd [#allocation6], 0
      %s36 = sshll.u32 %s1, 4
      %s37 = int_to_ptr.hbm [resolvable:$true] %s36
      %s38 = sshll.u32 [#allocation5], 4
      %s39 = int_to_ptr.vmem [resolvable:$true] %s38
      %44 = dma.hbm_to_vmem [thread:$0]  %s37, 256, %s39, [#allocation6], 128, 128, 8
    $region9: #{tpu_custom_call.1} parent=1 // pred_fallthru
      _
    // Predicated region
    $region10: #{tpu_custom_call.1} parent=1 // pred_check
      _
    $region11: #{tpu_custom_call.1} parent=1 // pred_check_branch
      %46 = sbr.rel (0) target = $region13
    $region12: #{tpu_custom_call.1} parent=1 // pred_region
      %48 = vsyncadd [#allocation6], 0
      %s49 = sshll.u32 %s2, 4
      %s50 = int_to_ptr.hbm [resolvable:$true] %s49
      %s51 = sshll.u32 [#allocation7], 4
      %s52 = int_to_ptr.vmem [resolvable:$true] %s51
      %57 = dma.hbm_to_vmem [thread:$0]  %s50, 256, %s52, [#allocation6], 128, 128, 8
    $region13: #{tpu_custom_call.1} parent=1 // pred_fallthru
      _
    // Predicated region
    $region14: #{tpu_custom_call.1} parent=1 // pred_check
      _
    $region15: #{tpu_custom_call.1} parent=1 // pred_check_branch
      %59 = sbr.rel (0) target = $region17
    $region16: #{tpu_custom_call.1} parent=1 // pred_region
      %61 = vsyncadd [#allocation9], 0
      %s62 = sshll.u32 %s3, 4
      %s63 = int_to_ptr.hbm [resolvable:$true] %s62
      %s64 = sshll.u32 [#allocation8], 4
      %s65 = int_to_ptr.vmem [resolvable:$true] %s64
      %70 = dma.hbm_to_vmem [thread:$0]  %s63, 256, %s65, [#allocation9], 128, 128, 8
    $region17: #{tpu_custom_call.1} parent=1 // pred_fallthru
      _
    // Predicated region
    $region18: #{tpu_custom_call.1} parent=1 // pred_check
      _
    $region19: #{tpu_custom_call.1} parent=1 // pred_check_branch
      %72 = sbr.rel (0) target = $region21
    $region20: #{tpu_custom_call.1} parent=1 // pred_region
      %74 = dma.done [#allocation3], 256
    $region21: #{tpu_custom_call.1} parent=1 // pred_fallthru
      _
    // Predicated region
    $region22: #{tpu_custom_call.1} parent=1 // pred_check
      _
    $region23: #{tpu_custom_call.1} parent=1 // pred_check_branch
      %76 = sbr.rel (0) target = $region25
    $region24: #{tpu_custom_call.1} parent=1 // pred_region
      %78 = dma.done [#allocation6], 256
    $region25: #{tpu_custom_call.1} parent=1 // pred_fallthru
      _
    // Predicated region
    $region26: #{tpu_custom_call.1} parent=1 // pred_check
      _
    $region27: #{tpu_custom_call.1} parent=1 // pred_check_branch
      %80 = sbr.rel (0) target = $region29
    $region28: #{tpu_custom_call.1} parent=1 // pred_region
      %82 = dma.done [#allocation6], 256
    $region29: #{tpu_custom_call.1} parent=1 // pred_fallthru
      _
    // Predicated region
    $region30: #{tpu_custom_call.1} parent=1 // pred_check
      _
    $region31: #{tpu_custom_call.1} parent=1 // pred_check_branch
      %84 = sbr.rel (0) target = $region33
    $region32: #{tpu_custom_call.1} parent=1 // pred_region
      %86 = dma.done [#allocation9], 256
    $region33: #{tpu_custom_call.1} parent=1 // pred_fallthru
      _
    %v87 = vld [vmem:[#allocation2] sm:$0xff]
    %v88 = vld [vmem:[#allocation2 + $0x8] sm:$0x1f]
    %v89 = vmul.f32 %v87, 0.01
    %v90 = vmul.f32 %v88, 0.01
    %v91 = vmax.f32 %v87, %v89
    %v92 = vmax.f32 %v88, %v90
    %93 = vst [vmem:[#allocation10] sm:$0xff] %v91
    %94 = vst [vmem:[#allocation10 + $0x8] sm:$0x1f] %v92
    %v95 = vld [vmem:[#allocation5] sm:$0xff]
    %v96 = vld [vmem:[#allocation5 + $0x8] sm:$0x1f]
    %v97 = vmul.f32 %v95, 0.01
    %v98 = vmul.f32 %v96, 0.01
    %v99 = vmax.f32 %v95, %v97
    %v100 = vmax.f32 %v96, %v98
    %101 = vst [vmem:[#allocation11] sm:$0xff] %v99
    %102 = vst [vmem:[#allocation11 + $0x8] sm:$0x1f] %v100
    %v103 = vld [vmem:[#allocation7] sm:$0xff]
    %v104 = vld [vmem:[#allocation7 + $0x8] sm:$0x1f]
    %v105 = vmul.f32 %v103, 0.01
    %v106 = vmul.f32 %v104, 0.01
    %v107 = vmax.f32 %v103, %v105
    %v108 = vmax.f32 %v104, %v106
    %109 = vst [vmem:[#allocation13] sm:$0xff] %v107
    %110 = vst [vmem:[#allocation13 + $0x8] sm:$0x1f] %v108
    %v111 = vld [vmem:[#allocation8] sm:$0xff]
    %v112 = vld [vmem:[#allocation8 + $0x8] sm:$0x1f]
    %v113 = vmul.f32 %v111, 0.01
    %v114 = vmul.f32 %v112, 0.01
    %v115 = vmax.f32 %v111, %v113
    %v116 = vmax.f32 %v112, %v114
    %117 = vst [vmem:[#allocation14] sm:$0xff] %v115
    %118 = vst [vmem:[#allocation14 + $0x8] sm:$0x1f] %v116
    // Predicated region
    $region34: #{tpu_custom_call.1} parent=1 // pred_check
      _
    $region35: #{tpu_custom_call.1} parent=1 // pred_check_branch
      %120 = sbr.rel (0) target = $region37
    $region36: #{tpu_custom_call.1} parent=1 // pred_region
      %122 = vsyncadd [#allocation4], 0
      %s123 = sshll.u32 [#allocation10], 4
      %s124 = int_to_ptr.vmem [resolvable:$true] %s123
      %s125 = sshll.u32 %s4, 4
      %s126 = int_to_ptr.hbm [resolvable:$true] %s125
      %131 = dma.vmem_to_hbm [thread:$0]  %s124, 256, %s126, [#allocation4], 128, 128, 8
    $region37: #{tpu_custom_call.1} parent=1 // pred_fallthru
      _
    // Predicated region
    $region38: #{tpu_custom_call.1} parent=1 // pred_check
      _
    $region39: #{tpu_custom_call.1} parent=1 // pred_check_branch
      %133 = sbr.rel (0) target = $region41
    $region40: #{tpu_custom_call.1} parent=1 // pred_region
      %135 = vsyncadd [#allocation12], 0
      %s136 = sshll.u32 [#allocation11], 4
      %s137 = int_to_ptr.vmem [resolvable:$true] %s136
      %s138 = sshll.u32 %s5, 4
      %s139 = int_to_ptr.hbm [resolvable:$true] %s138
      %144 = dma.vmem_to_hbm [thread:$0]  %s137, 256, %s139, [#allocation12], 128, 128, 8
    $region41: #{tpu_custom_call.1} parent=1 // pred_fallthru
      _
    // Predicated region
    $region42: #{tpu_custom_call.1} parent=1 // pred_check
      _
    $region43: #{tpu_custom_call.1} parent=1 // pred_check_branch
      %146 = sbr.rel (0) target = $region45
    $region44: #{tpu_custom_call.1} parent=1 // pred_region
      %148 = vsyncadd [#allocation12], 0
      %s149 = sshll.u32 [#allocation13], 4
      %s150 = int_to_ptr.vmem [resolvable:$true] %s149
      %s151 = sshll.u32 %s6, 4
      %s152 = int_to_ptr.hbm [resolvable:$true] %s151
      %157 = dma.vmem_to_hbm [thread:$0]  %s150, 256, %s152, [#allocation12], 128, 128, 8
    $region45: #{tpu_custom_call.1} parent=1 // pred_fallthru
      _
    // Predicated region
    $region46: #{tpu_custom_call.1} parent=1 // pred_check
      _
    $region47: #{tpu_custom_call.1} parent=1 // pred_check_branch
      %159 = sbr.rel (0) target = $region49
    $region48: #{tpu_custom_call.1} parent=1 // pred_region
      %161 = vsyncadd [#allocation15], 0
      %s162 = sshll.u32 [#allocation14], 4
      %s163 = int_to_ptr.vmem [resolvable:$true] %s162
      %s164 = sshll.u32 %s7, 4
      %s165 = int_to_ptr.hbm [resolvable:$true] %s164
      %170 = dma.vmem_to_hbm [thread:$0]  %s163, 256, %s165, [#allocation15], 128, 128, 8
    $region49: #{tpu_custom_call.1} parent=1 // pred_fallthru
      _
    // Predicated region
    $region50: #{tpu_custom_call.1} parent=1 // pred_check
      _
    $region51: #{tpu_custom_call.1} parent=1 // pred_check_branch
      %172 = sbr.rel (0) target = $region53
    $region52: #{tpu_custom_call.1} parent=1 // pred_region
      %174 = dma.done [#allocation4], 256
    $region53: #{tpu_custom_call.1} parent=1 // pred_fallthru
      _
    // Predicated region
    $region54: #{tpu_custom_call.1} parent=1 // pred_check
      _
    $region55: #{tpu_custom_call.1} parent=1 // pred_check_branch
      %176 = sbr.rel (0) target = $region57
    $region56: #{tpu_custom_call.1} parent=1 // pred_region
      %178 = dma.done [#allocation12], 256
    $region57: #{tpu_custom_call.1} parent=1 // pred_fallthru
      _
    // Predicated region
    $region58: #{tpu_custom_call.1} parent=1 // pred_check
      _
    $region59: #{tpu_custom_call.1} parent=1 // pred_check_branch
      %180 = sbr.rel (0) target = $region61
    $region60: #{tpu_custom_call.1} parent=1 // pred_region
      %182 = dma.done [#allocation12], 256
    $region61: #{tpu_custom_call.1} parent=1 // pred_fallthru
      _
    // Predicated region
    $region62: #{tpu_custom_call.1} parent=1 // pred_check
      _
    $region63: #{tpu_custom_call.1} parent=1 // pred_check_branch
      %184 = sbr.rel (0) target = $region65
    $region64: #{tpu_custom_call.1} parent=1 // pred_region
      %186 = dma.done [#allocation15], 256
    $region65: #{tpu_custom_call.1} parent=1 // pred_fallthru
      _
    %187 = vsyncpa [#allocation3], 1
    %188 = vsyncpa [#allocation6], 1
    %189 = vsyncpa [#allocation9], 1
    %190 = vsyncpa [#allocation4], 1
    %191 = vsyncpa [#allocation12], 1
    %192 = vsyncpa [#allocation15], 1

</llo_original>
